<compile_context>
chip_gen: v5e
topology: v5e:2x2
jax: 0.10.0
libtpu: 0.0.40
codegen_flags: <defaults>
</compile_context>

<pallas_src>
import functools

import jax
import jax.numpy as jnp
from jax.experimental import pallas as pl
from jax.experimental.pallas import tpu as pltpu


_NEG_INF = -1000000000.0  # exact mask fill value used by the PyTorch module


def _flash_sdpa_kernel(lens_ref, q_ref, k_ref, v_ref, o_ref,
                       m_scr, l_scr, acc_scr, *, scale, tk):
    """One (batch b, q-tile qi, kv-tile ki) grid step.

    Block views (leading batch dim squeezed away by the BlockSpecs):
      q_ref : (H, tq, D)    k_ref/v_ref : (H, tk, D)    o_ref : (H, tq, D)
    Scratch (persists across the kv reduction axis):
      m_scr/l_scr : (H, tq, 1) f32     acc_scr : (H, tq, D) f32
    """
    b = pl.program_id(0)
    ki = pl.program_id(2)

    @pl.when(ki == 0)
    def _():
        m_scr[...] = jnp.full_like(m_scr, -jnp.inf)
        l_scr[...] = jnp.zeros_like(l_scr)
        acc_scr[...] = jnp.zeros_like(acc_scr)

    # Fold the 1/sqrt(d_model) scale into Q (cheap: H*tq*D, not H*tq*tk).
    q = (q_ref[...] * scale).astype(k_ref.dtype)

    # scores = Q @ K^T: contract on D for both operands, batched over heads.
    # No explicit K transpose is ever materialized.
    s = jnp.einsum("hqd,hkd->hqk", q, k_ref[...],
                   preferred_element_type=jnp.float32)          # (H, tq, tk) f32

    # Key-padding mask: global key positions >= src_batch_lens[b] get exactly
    # -1e9 (replacement, matching masked_fill_, including the klen==0 case).
    klen = lens_ref[b]
    col = jax.lax.broadcasted_iota(jnp.int32, (1, 1, tk), 2) + ki * tk
    s = jnp.where(col >= klen, jnp.float32(_NEG_INF), s)

    # Online-softmax (flash) update.
    m_prev = m_scr[...]
    m_new = jnp.maximum(m_prev, jnp.max(s, axis=-1, keepdims=True))
    alpha = jnp.exp(m_prev - m_new)
    p = jnp.exp(s - m_new)                                       # (H, tq, tk) f32
    l_scr[...] = alpha * l_scr[...] + jnp.sum(p, axis=-1, keepdims=True)
    pv = jnp.einsum("hqk,hkd->hqd", p.astype(v_ref.dtype), v_ref[...],
                    preferred_element_type=jnp.float32)          # (H, tq, D) f32
    acc_scr[...] = alpha * acc_scr[...] + pv
    m_scr[...] = m_new

    @pl.when(ki == pl.num_programs(2) - 1)
    def _():
        inv_l = pl.reciprocal(l_scr[...], approx=True)  # EUP slot, ~free
        o_ref[...] = (acc_scr[...] * inv_l).astype(o_ref.dtype)


def _pick_tile(S, max_tile=256):
    """Largest convenient tile that evenly divides S (falls back to S)."""
    for t in (max_tile, 128, 64, 32, 16, 8):
        if S % t == 0:
            return min(t, S)
    return S


def scaled_dot_product_attention(Q, K, V, src_batch_lens, *, d_model,
                                 matmul_dtype=jnp.bfloat16,
                                 q_block=None, kv_block=None):
    """Pallas TPU scaled dot-product attention with per-batch key-length mask.

    Q, K, V:        [B, H, S, D]
    src_batch_lens: [B] int  (valid key length per batch element)
    matmul_dtype:   dtype fed to the MXU (None = keep input dtype); softmax
                    and accumulation are always f32.
    """
    B, H, S, D = Q.shape
    scale = 1.0 / float(d_model) ** 0.5

    tq = q_block or _pick_tile(S)
    tk = kv_block or _pick_tile(S)
    assert S % tq == 0 and S % tk == 0, "sequence length must tile evenly"

    if matmul_dtype is not None and Q.dtype != jnp.dtype(matmul_dtype):
        Q_in, K_in, V_in = (x.astype(matmul_dtype) for x in (Q, K, V))
    else:
        Q_in, K_in, V_in = Q, K, V

    kernel = functools.partial(_flash_sdpa_kernel, scale=scale, tk=tk)

    # Leading batch dim squeezed out of the kernel view; heads batched in-block.
    q_spec = pl.BlockSpec((None, H, tq, D), lambda b, qi, ki, lens: (b, 0, qi, 0))
    kv_spec = pl.BlockSpec((None, H, tk, D), lambda b, qi, ki, lens: (b, 0, ki, 0))
    o_spec = pl.BlockSpec((None, H, tq, D), lambda b, qi, ki, lens: (b, 0, qi, 0))

    return pl.pallas_call(
        kernel,
        out_shape=jax.ShapeDtypeStruct((B, H, S, D), Q.dtype),
        grid_spec=pltpu.PrefetchScalarGridSpec(
            num_scalar_prefetch=1,          # src_batch_lens lands in SMEM
            grid=(B, S // tq, S // tk),
            in_specs=[q_spec, kv_spec, kv_spec],
            out_specs=o_spec,
            scratch_shapes=[
                pltpu.VMEM((H, tq, 1), jnp.float32),   # running max   m
                pltpu.VMEM((H, tq, 1), jnp.float32),   # running denom l
                pltpu.VMEM((H, tq, D), jnp.float32),   # running numer acc
            ],
        ),
        compiler_params=pltpu.CompilerParams(
            # batch + q-tile axes are independent (keeps both v7x TensorCores
            # busy even for B*H small); kv axis carries the online-softmax
            # accumulator -> "arbitrary" (innermost reduction axis).
            dimension_semantics=("parallel", "parallel", "arbitrary"),
        ),
    )(src_batch_lens.astype(jnp.int32), Q_in, K_in, V_in)


def _reference(Q, K, V, src_batch_lens, *, d_model):
    """Pure-JAX reference mirroring the PyTorch forward (eval mode)."""
    scale = 1.0 / float(d_model) ** 0.5
    scores = jnp.einsum("bhqd,bhkd->bhqk", Q, K,
                        precision=jax.lax.Precision.HIGHEST) * scale
    S = Q.shape[2]
    col = jnp.arange(S)[None, None, None, :]
    mask = col >= src_batch_lens[:, None, None, None]
    scores = jnp.where(mask, _NEG_INF, scores)
    attn = jax.nn.softmax(scores, axis=-1)
    return jnp.einsum("bhqk,bhkd->bhqd", attn, V,
                      precision=jax.lax.Precision.HIGHEST)


if __name__ == "__main__":
    # Small shapes consistent with the module: d_model (head dim) = 32, seq = 8
    B, H, S, D = 2, 2, 8, 32
    d_model = D

    key = jax.random.PRNGKey(0)
    kq, kk, kv = jax.random.split(key, 3)
    Q = jax.random.normal(kq, (B, H, S, D), dtype=jnp.float32)
    K = jax.random.normal(kk, (B, H, S, D), dtype=jnp.float32)
    V = jax.random.normal(kv, (B, H, S, D), dtype=jnp.float32)
    src_batch_lens = jnp.array([8, 5], dtype=jnp.int32)  # per-batch valid key lens

    out = scaled_dot_product_attention(Q, K, V, src_batch_lens, d_model=d_model)
    out = jax.block_until_ready(out)

    ref = _reference(Q, K, V, src_batch_lens, d_model=d_model)
    assert out.shape == (B, H, S, D)
    assert out.dtype == Q.dtype
    # bf16 MXU inputs + approx reciprocal -> loose but meaningful tolerance.
    assert jnp.allclose(out, ref, atol=5e-2, rtol=5e-2), "mismatch vs reference"

    print("KERNEL_OK")
</pallas_src>

<mosaic_0001>
module attributes {stable_mosaic.version = 11 : i64} {
  func.func @_flash_sdpa_kernel(%arg0: i32, %arg1: i32, %arg2: i32, %arg3: memref<2xi32, #tpu.memory_space<smem>>, %arg4: memref<1x2x8x32xbf16, #tpu.memory_space<vmem>>, %arg5: memref<1x2x8x32xbf16, #tpu.memory_space<vmem>>, %arg6: memref<1x2x8x32xbf16, #tpu.memory_space<vmem>>, %arg7: memref<1x2x8x32xf32, #tpu.memory_space<vmem>>, %arg8: memref<2x8x1xf32, #tpu.memory_space<vmem>>, %arg9: memref<2x8x1xf32, #tpu.memory_space<vmem>>, %arg10: memref<2x8x32xf32, #tpu.memory_space<vmem>>) attributes {dimension_semantics = [#tpu.dimension_semantics<parallel>, #tpu.dimension_semantics<parallel>, #tpu.dimension_semantics<arbitrary>], iteration_bounds = array<i64: 2, 1, 1>, scalar_prefetch = 1 : i64, scratch_operands = 3 : i64, tpu.core_type = #tpu.core_type<tc>, window_params = [{transform_indices = @transform_0, window_bounds = array<i64: 1, 2, 8, 32>}, {transform_indices = @transform_1, window_bounds = array<i64: 1, 2, 8, 32>}, {transform_indices = @transform_2, window_bounds = array<i64: 1, 2, 8, 32>}, {transform_indices = @transform_3, window_bounds = array<i64: 1, 2, 8, 32>}]} {
    %c0_i32 = arith.constant 0 : i32
    %0 = arith.cmpi eq, %arg2, %c0_i32 : i32
    %1 = arith.extui %0 : i1 to i32
    %c0_i32_0 = arith.constant 0 : i32
    %2 = arith.cmpi ne, %1, %c0_i32_0 : i32
    scf.if %2 {
      %cst_37 = arith.constant 0xFF800000 : f32
      %50 = vector.broadcast %cst_37 : f32 to vector<2x8x1xf32>
      %c0_38 = arith.constant 0 : index
      %c0_39 = arith.constant 0 : index
      %c0_40 = arith.constant 0 : index
      %51 = vector.load %arg8[%c0_38, %c0_39, %c0_40] : memref<2x8x1xf32, #tpu.memory_space<vmem>>, vector<2x8x1xf32>
      tpu.vector_store %arg8[%c0_38, %c0_39, %c0_40], %50 {strides = array<i32>} : memref<2x8x1xf32, #tpu.memory_space<vmem>>, vector<2x8x1xf32>,
      %cst_41 = arith.constant 0.000000e+00 : f32
      %52 = vector.broadcast %cst_41 : f32 to vector<2x8x1xf32>
      %c0_42 = arith.constant 0 : index
      %c0_43 = arith.constant 0 : index
      %c0_44 = arith.constant 0 : index
      %53 = vector.load %arg9[%c0_42, %c0_43, %c0_44] : memref<2x8x1xf32, #tpu.memory_space<vmem>>, vector<2x8x1xf32>
      tpu.vector_store %arg9[%c0_42, %c0_43, %c0_44], %52 {strides = array<i32>} : memref<2x8x1xf32, #tpu.memory_space<vmem>>, vector<2x8x1xf32>,
      %cst_45 = arith.constant 0.000000e+00 : f32
      %54 = vector.broadcast %cst_45 : f32 to vector<2x8x32xf32>
      %c0_46 = arith.constant 0 : index
      %c0_47 = arith.constant 0 : index
      %c0_48 = arith.constant 0 : index
      %55 = vector.load %arg10[%c0_46, %c0_47, %c0_48] : memref<2x8x32xf32, #tpu.memory_space<vmem>>, vector<2x8x32xf32>
      tpu.vector_store %arg10[%c0_46, %c0_47, %c0_48], %54 {strides = array<i32>} : memref<2x8x32xf32, #tpu.memory_space<vmem>>, vector<2x8x32xf32>,
    } else {
    }
    %c0 = arith.constant 0 : index
    %c0_1 = arith.constant 0 : index
    %c0_2 = arith.constant 0 : index
    %c0_3 = arith.constant 0 : index
    %3 = vector.load %arg4[%c0, %c0_1, %c0_2, %c0_3] : memref<1x2x8x32xbf16, #tpu.memory_space<vmem>>, vector<1x2x8x32xbf16>
    %4 = vector.shape_cast %3 : vector<1x2x8x32xbf16> to vector<2x8x32xbf16>
    %cst = arith.constant 1.767580e-01 : bf16
    %5 = vector.broadcast %cst : bf16 to vector<2x8x32xbf16>
    %6 = arith.mulf %4, %5 : vector<2x8x32xbf16>
    %c0_4 = arith.constant 0 : index
    %c0_5 = arith.constant 0 : index
    %c0_6 = arith.constant 0 : index
    %c0_7 = arith.constant 0 : index
    %7 = vector.load %arg5[%c0_4, %c0_5, %c0_6, %c0_7] : memref<1x2x8x32xbf16, #tpu.memory_space<vmem>>, vector<1x2x8x32xbf16>
    %8 = vector.shape_cast %7 : vector<1x2x8x32xbf16> to vector<2x8x32xbf16>
    "tpu.trace_start"() <{level = 10 : i32, message = "hqd,hkd->hqk"}> : () -> ()
    %cst_8 = arith.constant dense<0.000000e+00> : vector<2x8x8xf32>
    %9 = tpu.matmul %6, %8, %cst_8 {dimension_numbers = #tpu.dot_dimension_numbers<[2], [2], [1], [1], [0, 0, 0, 1, 1, 1], [0], [0]>} : vector<2x8x32xbf16>, vector<2x8x32xbf16>, vector<2x8x8xf32> -> vector<2x8x8xf32>
    "tpu.trace_stop"() : () -> ()
    %10 = arith.index_cast %arg0 : i32 to index
    %11 = memref.load %arg3[%10] : memref<2xi32, #tpu.memory_space<smem>>
    %12 = tpu.iota {dimensions = array<i32: 2>} : vector<1x1x8xi32>
    %c8_i32 = arith.constant 8 : i32
    %13 = arith.muli %arg2, %c8_i32 : i32
    %14 = vector.broadcast %13 : i32 to vector<1x1x8xi32>
    %15 = arith.addi %12, %14 : vector<1x1x8xi32>
    %16 = vector.broadcast %11 : i32 to vector<1x1x8xi32>
    %17 = arith.cmpi sge, %15, %16 : vector<1x1x8xi32>
    %cst_9 = arith.constant -1.000000e+09 : f32
    %18 = vector.shape_cast %17 : vector<1x1x8xi1> to vector<1x1x8xi1>
    %19 = vector.broadcast %18 : vector<1x1x8xi1> to vector<2x8x8xi1>
    %20 = vector.broadcast %cst_9 : f32 to vector<2x8x8xf32>
    %21 = arith.select %19, %20, %9 : vector<2x8x8xi1>, vector<2x8x8xf32>
    %c0_10 = arith.constant 0 : index
    %c0_11 = arith.constant 0 : index
    %c0_12 = arith.constant 0 : index
    %22 = vector.load %arg8[%c0_10, %c0_11, %c0_12] : memref<2x8x1xf32, #tpu.memory_space<vmem>>, vector<2x8x1xf32>
    %cst_13 = arith.constant dense<0xFF800000> : vector<2x8xf32>
    %23 = vector.multi_reduction <maximumf>, %21, %cst_13 [2] : vector<2x8x8xf32> to vector<2x8xf32>
    %24 = vector.shape_cast %23 : vector<2x8xf32> to vector<2x8x1xf32>
    %25 = arith.maximumf %22, %24 : vector<2x8x1xf32>
    %26 = arith.subf %22, %25 : vector<2x8x1xf32>
    %27 = math.exp %26 : vector<2x8x1xf32>
    %28 = vector.broadcast %25 : vector<2x8x1xf32> to vector<2x8x8xf32>
    %29 = arith.subf %21, %28 : vector<2x8x8xf32>
    %30 = math.exp %29 : vector<2x8x8xf32>
    %c0_14 = arith.constant 0 : index
    %c0_15 = arith.constant 0 : index
    %c0_16 = arith.constant 0 : index
    %31 = vector.load %arg9[%c0_14, %c0_15, %c0_16] : memref<2x8x1xf32, #tpu.memory_space<vmem>>, vector<2x8x1xf32>
    %32 = arith.mulf %27, %31 : vector<2x8x1xf32>
    %cst_17 = arith.constant dense<0.000000e+00> : vector<2x8xf32>
    %33 = vector.multi_reduction <add>, %30, %cst_17 [2] : vector<2x8x8xf32> to vector<2x8xf32>
    %34 = vector.shape_cast %33 : vector<2x8xf32> to vector<2x8x1xf32>
    %35 = arith.addf %32, %34 : vector<2x8x1xf32>
    %c0_18 = arith.constant 0 : index
    %c0_19 = arith.constant 0 : index
    %c0_20 = arith.constant 0 : index
    %36 = vector.load %arg9[%c0_18, %c0_19, %c0_20] : memref<2x8x1xf32, #tpu.memory_space<vmem>>, vector<2x8x1xf32>
    tpu.vector_store %arg9[%c0_18, %c0_19, %c0_20], %35 {strides = array<i32>} : memref<2x8x1xf32, #tpu.memory_space<vmem>>, vector<2x8x1xf32>,
    %37 = arith.truncf %30 : vector<2x8x8xf32> to vector<2x8x8xbf16>
    %c0_21 = arith.constant 0 : index
    %c0_22 = arith.constant 0 : index
    %c0_23 = arith.constant 0 : index
    %c0_24 = arith.constant 0 : index
    %38 = vector.load %arg6[%c0_21, %c0_22, %c0_23, %c0_24] : memref<1x2x8x32xbf16, #tpu.memory_space<vmem>>, vector<1x2x8x32xbf16>
    %39 = vector.shape_cast %38 : vector<1x2x8x32xbf16> to vector<2x8x32xbf16>
    "tpu.trace_start"() <{level = 10 : i32, message = "hqk,hkd->hqd"}> : () -> ()
    %cst_25 = arith.constant dense<0.000000e+00> : vector<2x8x32xf32>
    %40 = tpu.matmul %37, %39, %cst_25 {dimension_numbers = #tpu.dot_dimension_numbers<[2], [1], [1], [2], [0, 0, 0, 1, 1, 2], [0], [0]>} : vector<2x8x8xbf16>, vector<2x8x32xbf16>, vector<2x8x32xf32> -> vector<2x8x32xf32>
    "tpu.trace_stop"() : () -> ()
    %c0_26 = arith.constant 0 : index
    %c0_27 = arith.constant 0 : index
    %c0_28 = arith.constant 0 : index
    %41 = vector.load %arg10[%c0_26, %c0_27, %c0_28] : memref<2x8x32xf32, #tpu.memory_space<vmem>>, vector<2x8x32xf32>
    %42 = vector.broadcast %27 : vector<2x8x1xf32> to vector<2x8x32xf32>
    %43 = arith.mulf %42, %41 : vector<2x8x32xf32>
    %44 = arith.addf %43, %40 : vector<2x8x32xf32>
    %c0_29 = arith.constant 0 : index
    %c0_30 = arith.constant 0 : index
    %c0_31 = arith.constant 0 : index
    %45 = vector.load %arg10[%c0_29, %c0_30, %c0_31] : memref<2x8x32xf32, #tpu.memory_space<vmem>>, vector<2x8x32xf32>
    tpu.vector_store %arg10[%c0_29, %c0_30, %c0_31], %44 {strides = array<i32>} : memref<2x8x32xf32, #tpu.memory_space<vmem>>, vector<2x8x32xf32>,
    %c0_32 = arith.constant 0 : index
    %c0_33 = arith.constant 0 : index
    %c0_34 = arith.constant 0 : index
    %46 = vector.load %arg8[%c0_32, %c0_33, %c0_34] : memref<2x8x1xf32, #tpu.memory_space<vmem>>, vector<2x8x1xf32>
    tpu.vector_store %arg8[%c0_32, %c0_33, %c0_34], %25 {strides = array<i32>} : memref<2x8x1xf32, #tpu.memory_space<vmem>>, vector<2x8x1xf32>,
    %c0_i32_35 = arith.constant 0 : i32
    %47 = arith.cmpi eq, %arg2, %c0_i32_35 : i32
    %48 = arith.extui %47 : i1 to i32
    %c0_i32_36 = arith.constant 0 : i32
    %49 = arith.cmpi ne, %48, %c0_i32_36 : i32
    scf.if %49 {
      %c0_37 = arith.constant 0 : index
      %c0_38 = arith.constant 0 : index
      %c0_39 = arith.constant 0 : index
      %50 = vector.load %arg9[%c0_37, %c0_38, %c0_39] : memref<2x8x1xf32, #tpu.memory_space<vmem>>, vector<2x8x1xf32>
      %51 = tpu.reciprocal %50 {approx = true} : vector<2x8x1xf32> -> vector<2x8x1xf32>
      %c0_40 = arith.constant 0 : index
      %c0_41 = arith.constant 0 : index
      %c0_42 = arith.constant 0 : index
      %52 = vector.load %arg10[%c0_40, %c0_41, %c0_42] : memref<2x8x32xf32, #tpu.memory_space<vmem>>, vector<2x8x32xf32>
      %53 = vector.broadcast %51 : vector<2x8x1xf32> to vector<2x8x32xf32>
      %54 = arith.mulf %52, %53 : vector<2x8x32xf32>
      %c0_43 = arith.constant 0 : index
      %c0_44 = arith.constant 0 : index
      %c0_45 = arith.constant 0 : index
      %c0_46 = arith.constant 0 : index
      %55 = vector.load %arg7[%c0_43, %c0_44, %c0_45, %c0_46] : memref<1x2x8x32xf32, #tpu.memory_space<vmem>>, vector<1x2x8x32xf32>
      %56 = vector.shape_cast %55 : vector<1x2x8x32xf32> to vector<2x8x32xf32>
      %57 = vector.shape_cast %54 : vector<2x8x32xf32> to vector<1x2x8x32xf32>
      tpu.vector_store %arg7[%c0_43, %c0_44, %c0_45, %c0_46], %57 {strides = array<i32>} : memref<1x2x8x32xf32, #tpu.memory_space<vmem>>, vector<1x2x8x32xf32>,
    } else {
    }
    return
  }
  func.func @transform_0(%arg0: i32, %arg1: i32, %arg2: i32, %arg3: memref<2xi32, #tpu.memory_space<smem>>) -> (i32, i32, i32, i32) {
    %c0_i32 = arith.constant 0 : i32
    %c0_i32_0 = arith.constant 0 : i32
    %c0_i32_1 = arith.constant 0 : i32
    return %arg0, %c0_i32, %arg1, %c0_i32_0 : i32, i32, i32, i32
  }
  func.func @transform_1(%arg0: i32, %arg1: i32, %arg2: i32, %arg3: memref<2xi32, #tpu.memory_space<smem>>) -> (i32, i32, i32, i32) {
    %c0_i32 = arith.constant 0 : i32
    %c0_i32_0 = arith.constant 0 : i32
    %c0_i32_1 = arith.constant 0 : i32
    return %arg0, %c0_i32, %arg2, %c0_i32_0 : i32, i32, i32, i32
  }
  func.func @transform_2(%arg0: i32, %arg1: i32, %arg2: i32, %arg3: memref<2xi32, #tpu.memory_space<smem>>) -> (i32, i32, i32, i32) {
    %c0_i32 = arith.constant 0 : i32
    %c0_i32_0 = arith.constant 0 : i32
    %c0_i32_1 = arith.constant 0 : i32
    return %arg0, %c0_i32, %arg2, %c0_i32_0 : i32, i32, i32, i32
  }
  func.func @transform_3(%arg0: i32, %arg1: i32, %arg2: i32, %arg3: memref<2xi32, #tpu.memory_space<smem>>) -> (i32, i32, i32, i32) {
    %c0_i32 = arith.constant 0 : i32
    %c0_i32_0 = arith.constant 0 : i32
    %c0_i32_1 = arith.constant 0 : i32
    return %arg0, %c0_i32, %arg1, %c0_i32_0 : i32, i32, i32, i32
  }
}

</mosaic_0001>

<llo_original>
// kernel: tpu_custom_call.1
$region0: #{tpu_custom_call.1}
  #allocation0 [shape = 'u32[]', space=smem, size = 0x4, offset = 0x4, fixed_abs, tag = 'smem constant byte address 0x4 - core index']
  #allocation1 [shape = 'u32[72,128]{1,0:T(1,128)}', space=vmem, size = 0x9000, scoped, tag = 'internal scratch']
  #allocation2 [shape = 'f32[2,8,1]{2,1,0:T(8,128)}', space=vmem, size = 0x2000, scoped, tag = 'scratch operand']
  #allocation3 [shape = 'f32[2,8,1]{2,1,0:T(8,128)}', space=vmem, size = 0x2000, scoped, tag = 'scratch operand']
  #allocation4 [shape = 'f32[2,8,32]{2,1,0:T(8,128)}', space=vmem, size = 0x2000, scoped, tag = 'scratch operand']
  #allocation5 [shape = 's32[1]{0}', space=sflag, size = 0x4, scoped, tag = 'scoped memory for tpu_custom_call.1']
  #allocation6 [shape = 'u8[512]{0}', space=smem, size = 0x200, scoped, tag = 'prefetched SMEM operand 0']
  %s0 = inlined_call_operand.hbm [shape: s32[2], index: 0, kind: input, shape index: {}]
  %s1 = inlined_call_operand.hbm [shape: bf16[2,2,8,32], index: 1, kind: input, shape index: {}]
  %s2 = inlined_call_operand.hbm [shape: bf16[2,2,8,32], index: 2, kind: input, shape index: {}]
  %s3 = inlined_call_operand.hbm [shape: bf16[2,2,8,32], index: 3, kind: input, shape index: {}]
  %s4 = inlined_call_operand.hbm [shape: f32[2,2,8,32], index: 4, kind: output, shape index: {}]
  %s5 = sld [smem:[#allocation0]]
  $region65: #{tpu_custom_call.1} parent=0
    _
  %s7 = ssub.s32 1, %s5
  %s8 = scalar_select 0, %s7, %s5
  %s10 = sshll.u32 %s0, 4
  %s11 = int_to_ptr.hbm [resolvable:$true] %s10
  %13 = dma.hbm_to_smem %s11, 16, [#allocation6], [#allocation5]
  %15 = dma.done [#allocation5], 16
  %16 = sfence
  $region1: #{tpu_custom_call.1} parent=0
    #allocation7 [shape = 'u8[8192]{0}', space=vmem, size = 0x2000, scoped, tag = 'input window, operand 1']
    #allocation8 [shape = 's32[2]{0}', space=sflag, size = 0x8, scoped, tag = 'scoped memory for tpu_custom_call.1']
    #allocation9 [shape = 's32[2]{0}', space=sflag, size = 0x8, scoped, tag = 'scoped memory for tpu_custom_call.1']
    #allocation10 [shape = 'u8[8192]{0}', space=vmem, size = 0x2000, scoped, tag = 'input window, operand 2']
    #allocation11 [shape = 's32[2]{0}', space=sflag, size = 0x8, scoped, tag = 'scoped memory for tpu_custom_call.1']
    #allocation12 [shape = 'u8[8192]{0}', space=vmem, size = 0x2000, scoped, tag = 'input window, operand 3']
    #allocation13 [shape = 'u8[16384]{0}', space=vmem, size = 0x4000, scoped, tag = 'output window, operand 0']
    %17 = vsyncpa [#allocation8], 0
    %s18 = scalar_lea.sflag [#allocation8], 1
    %19 = vsyncpa %s18, 0
    %20 = vsyncpa [#allocation11], 0
    %s21 = scalar_lea.sflag [#allocation11], 1
    %22 = vsyncpa %s21, 0
    %23 = vsyncpa [#allocation9], 0
    %s24 = scalar_lea.sflag [#allocation9], 1
    %25 = vsyncpa %s24, 0
    loop: start=0, step=1, limit=4
    $region2: #{tpu_custom_call.1} parent=1 // loop_pre_header
      _
    $region3: #{tpu_custom_call.1} parent=1 // loop_header
      %s27 = sphi 0, %s31
      %p28 = scmp.ge.s32.totalorder %s27, 4
      %s34 = sphi 0, %s53
      %s35 = sphi 0, %s49
      %s36 = sphi 0, %s45
      %s37 = sphi 0, %s34
      %s38 = sphi 0, %s35
      %s39 = sphi 0, %s36
      %s40 = sphi 0, %s37
      %s41 = sphi 0, %s38
      %s42 = sphi 0, %s39
      %s58 = sphi 0, %s60
      %s61 = sphi 0, %s58
      %s62 = sphi 0, %s61
      %s78 = sphi 0, %s62
      %s86 = sphi 0, %s88
      %s89 = sphi 0, %s86
      %s90 = sphi 0, %s89
      %s106 = sphi 0, %s90
      %s114 = sphi 0, %s116
      %s117 = sphi 0, %s114
      %s118 = sphi 0, %s117
      %s134 = sphi 0, %s118
      %s142 = sphi 0, %s144
      %s145 = sphi 0, %s142
      %s146 = sphi 0, %s145
      %s162 = sphi 0, %s146
    $region4: #{tpu_custom_call.1} parent=1 // loop_header_branch
      %30 = sbr.rel (%p28) target = $region8
    $region5: #{tpu_custom_call.1} parent=1 // loop_body
      %s32 = ssub.s32 %s27, 1
      %s33 = ssub.s32 %s27, 2
      %s43 = sadd.s32 1, %s36
      %p44 = scmp.ge.s32.totalorder %s43, 1
      %s45 = scalar_select %p44, 0, %s43
      %s46 = sadd.s32 1, %s35
      %s47 = scalar_select %p44, %s46, %s35
      %p48 = scmp.ge.s32.totalorder %s47, 1
      %s49 = scalar_select %p48, 0, %s47
      %s50 = sadd.s32 1, %s34
      %s51 = scalar_select %p48, %s50, %s34
      %p52 = scmp.ge.s32.totalorder %s51, 2
      %s53 = scalar_select %p52, 0, %s51
      %s54 = ssub.s32 %s34, %s53
      %s55 = ssub.s32 %s35, %s49
      %s56 = sor.u32 %s54, %s55
      %p57 = scmp.eq.s32.totalorder %s56, 0
      %s59 = sadd.s32 %s58, 1
      %s60 = scalar_select %p57, %s58, %s59
      %p63 = pneg %p57
      %p64 = scmp.eq.s32.totalorder %s27, 1
      %p65 = por %p63, %p64
      %p66 = scmp.ne.s32.totalorder %s58, %s61
      %p67 = scmp.eq.s32.totalorder %s27, 0
      %p68 = por %p66, %p67
      %p69 = scmp.ne.s32.totalorder %s58, %s61
      %p70 = scmp.eq.s32.totalorder %s32, 1
      %p71 = por %p69, %p70
      %p72 = scmp.ne.s32.totalorder %s61, %s62
      %p73 = scmp.eq.s32.totalorder %s32, 0
      %p74 = por %p72, %p73
      %p75 = scmp.ne.s32.totalorder %s61, %s62
      %p76 = scmp.eq.s32.totalorder %s33, 1
      %p77 = por %p75, %p76
      %p79 = scmp.ne.s32.totalorder %s62, %s78
      %p80 = scmp.eq.s32.totalorder %s33, 0
      %p81 = por %p79, %p80
      %s82 = ssub.s32 %s34, %s53
      %s83 = ssub.s32 %s36, %s45
      %s84 = sor.u32 %s82, %s83
      %p85 = scmp.eq.s32.totalorder %s84, 0
      %s87 = sadd.s32 %s86, 1
      %s88 = scalar_select %p85, %s86, %s87
      %p91 = pneg %p85
      %p92 = scmp.eq.s32.totalorder %s27, 1
      %p93 = por %p91, %p92
      %p94 = scmp.ne.s32.totalorder %s86, %s89
      %p95 = scmp.eq.s32.totalorder %s27, 0
      %p96 = por %p94, %p95
      %p97 = scmp.ne.s32.totalorder %s86, %s89
      %p98 = scmp.eq.s32.totalorder %s32, 1
      %p99 = por %p97, %p98
      %p100 = scmp.ne.s32.totalorder %s89, %s90
      %p101 = scmp.eq.s32.totalorder %s32, 0
      %p102 = por %p100, %p101
      %p103 = scmp.ne.s32.totalorder %s89, %s90
      %p104 = scmp.eq.s32.totalorder %s33, 1
      %p105 = por %p103, %p104
      %p107 = scmp.ne.s32.totalorder %s90, %s106
      %p108 = scmp.eq.s32.totalorder %s33, 0
      %p109 = por %p107, %p108
      %s110 = ssub.s32 %s34, %s53
      %s111 = ssub.s32 %s36, %s45
      %s112 = sor.u32 %s110, %s111
      %p113 = scmp.eq.s32.totalorder %s112, 0
      %s115 = sadd.s32 %s114, 1
      %s116 = scalar_select %p113, %s114, %s115
      %p119 = pneg %p113
      %p120 = scmp.eq.s32.totalorder %s27, 1
      %p121 = por %p119, %p120
      %p122 = scmp.ne.s32.totalorder %s114, %s117
      %p123 = scmp.eq.s32.totalorder %s27, 0
      %p124 = por %p122, %p123
      %p125 = scmp.ne.s32.totalorder %s114, %s117
      %p126 = scmp.eq.s32.totalorder %s32, 1
      %p127 = por %p125, %p126
      %p128 = scmp.ne.s32.totalorder %s117, %s118
      %p129 = scmp.eq.s32.totalorder %s32, 0
      %p130 = por %p128, %p129
      %p131 = scmp.ne.s32.totalorder %s117, %s118
      %p132 = scmp.eq.s32.totalorder %s33, 1
      %p133 = por %p131, %p132
      %p135 = scmp.ne.s32.totalorder %s118, %s134
      %p136 = scmp.eq.s32.totalorder %s33, 0
      %p137 = por %p135, %p136
      %s138 = ssub.s32 %s34, %s53
      %s139 = ssub.s32 %s35, %s49
      %s140 = sor.u32 %s138, %s139
      %p141 = scmp.eq.s32.totalorder %s140, 0
      %s143 = sadd.s32 %s142, 1
      %s144 = scalar_select %p141, %s142, %s143
      %p147 = pneg %p141
      %p148 = scmp.eq.s32.totalorder %s27, 1
      %p149 = por %p147, %p148
      %p150 = scmp.ne.s32.totalorder %s142, %s145
      %p151 = scmp.eq.s32.totalorder %s27, 0
      %p152 = por %p150, %p151
      %p153 = scmp.ne.s32.totalorder %s142, %s145
      %p154 = scmp.eq.s32.totalorder %s32, 1
      %p155 = por %p153, %p154
      %p156 = scmp.ne.s32.totalorder %s145, %s146
      %p157 = scmp.eq.s32.totalorder %s32, 0
      %p158 = por %p156, %p157
      %p159 = scmp.ne.s32.totalorder %s145, %s146
      %p160 = scmp.eq.s32.totalorder %s33, 1
      %p161 = por %p159, %p160
      %p163 = scmp.ne.s32.totalorder %s146, %s162
      %p164 = scmp.eq.s32.totalorder %s33, 0
      %p165 = por %p163, %p164
      %p166 = scmp.le.s32.totalorder 1, %s27
      %p167 = scmp.lt.s32.totalorder %s27, 3
      %p168 = pnand %p166, %p167
      %p169 = pneg %p168
      // Predicated region
      $region9: #{tpu_custom_call.1} parent=5 // pred_check
        _
      $region10: #{tpu_custom_call.1} parent=5 // pred_check_branch
        %171 = sbr.rel (%p168) target = $region12
      $region11: #{tpu_custom_call.1} parent=5 // pred_region
        %s172 = ssub.s32 %s27, 1
      $region12: #{tpu_custom_call.1} parent=5 // pred_fallthru
        _
      %p173 = scmp.lt.s32.totalorder %s27, 2
      // Predicated region
      $region13: #{tpu_custom_call.1} parent=5 // pred_check
        %p174 = pneg %p173
      $region14: #{tpu_custom_call.1} parent=5 // pred_check_branch
        %176 = sbr.rel (%p174) target = $region16
      $region15: #{tpu_custom_call.1} parent=5 // pred_region
        // Predicated region
        $region17: #{tpu_custom_call.1} parent=15 // pred_check
          %p177 = pneg %p68
        $region18: #{tpu_custom_call.1} parent=15 // pred_check_branch
          %179 = sbr.rel (%p177) target = $region20
        $region19: #{tpu_custom_call.1} parent=15 // pred_region
          %s180 = sand.u32 %s58, 1
          %s181 = scalar_lea.sflag [#allocation8], %s180
          %s182 = sand.u32 %s58, 1
          %s183 = smul.addr %s182, 8
          %s184 = scalar_lea.vmem [#allocation7], %s183
          %186 = vsyncadd %s181, 0
          %s187 = smul.addr %s34, 2
          %s188 = sadd.s32 %s35, %s187
          %s189 = smul.addr %s188, 4
          %s190 = scalar_lea.hbm %s1, %s189
          %s191 = sshll.u32 %s190, 4
          %s192 = int_to_ptr.hbm [resolvable:$true] %s191
          %s193 = sshll.u32 %s184, 4
          %s194 = int_to_ptr.vmem [resolvable:$true] %s193
          %199 = dma.hbm_to_vmem [thread:$0]  %s192, 128, %s194, %s181, 64, 64, 4
        $region20: #{tpu_custom_call.1} parent=15 // pred_fallthru
          _
        // Predicated region
        $region21: #{tpu_custom_call.1} parent=15 // pred_check
          %p200 = pneg %p96
        $region22: #{tpu_custom_call.1} parent=15 // pred_check_branch
          %202 = sbr.rel (%p200) target = $region24
        $region23: #{tpu_custom_call.1} parent=15 // pred_region
          %s203 = sand.u32 %s27, 1
          %s204 = scalar_lea.sflag [#allocation11], %s203
          %s205 = sand.u32 %s86, 1
          %s206 = smul.addr %s205, 8
          %s207 = scalar_lea.vmem [#allocation10], %s206
          %209 = vsyncadd %s204, 0
          %s210 = smul.addr %s34, 2
          %s211 = sadd.s32 %s36, %s210
          %s212 = smul.addr %s211, 4
          %s213 = scalar_lea.hbm %s2, %s212
          %s214 = sshll.u32 %s213, 4
          %s215 = int_to_ptr.hbm [resolvable:$true] %s214
          %s216 = sshll.u32 %s207, 4
          %s217 = int_to_ptr.vmem [resolvable:$true] %s216
          %222 = dma.hbm_to_vmem [thread:$0]  %s215, 128, %s217, %s204, 64, 64, 4
        $region24: #{tpu_custom_call.1} parent=15 // pred_fallthru
          _
        // Predicated region
        $region25: #{tpu_custom_call.1} parent=15 // pred_check
          %p223 = pneg %p124
        $region26: #{tpu_custom_call.1} parent=15 // pred_check_branch
          %225 = sbr.rel (%p223) target = $region28
        $region27: #{tpu_custom_call.1} parent=15 // pred_region
          %s226 = sand.u32 %s27, 1
          %s227 = scalar_lea.sflag [#allocation11], %s226
          %s228 = sand.u32 %s114, 1
          %s229 = smul.addr %s228, 8
          %s230 = scalar_lea.vmem [#allocation12], %s229
          %232 = vsyncadd %s227, 0
          %s233 = smul.addr %s34, 2
          %s234 = sadd.s32 %s36, %s233
          %s235 = smul.addr %s234, 4
          %s236 = scalar_lea.hbm %s3, %s235
          %s237 = sshll.u32 %s236, 4
          %s238 = int_to_ptr.hbm [resolvable:$true] %s237
          %s239 = sshll.u32 %s230, 4
          %s240 = int_to_ptr.vmem [resolvable:$true] %s239
          %245 = dma.hbm_to_vmem [thread:$0]  %s238, 128, %s240, %s227, 64, 64, 4
        $region28: #{tpu_custom_call.1} parent=15 // pred_fallthru
          _
      $region16: #{tpu_custom_call.1} parent=5 // pred_fallthru
        _
      %p246 = scmp.le.s32.totalorder 1, %s27
      %p247 = scmp.lt.s32.totalorder %s27, 3
      %p248 = pnand %p246, %p247
      %p249 = pneg %p248
      // Predicated region
      $region29: #{tpu_custom_call.1} parent=5 // pred_check
        _
      $region30: #{tpu_custom_call.1} parent=5 // pred_check_branch
        %251 = sbr.rel (%p248) target = $region32
      $region31: #{tpu_custom_call.1} parent=5 // pred_region
        %s252 = ssub.s32 %s27, 1
        %s253 = sand.u32 %s61, 1
        %s254 = scalar_lea.sflag [#allocation8], %s253
        %s255 = sand.u32 %s61, 1
        %s256 = smul.addr %s255, 8
        %s257 = scalar_lea.vmem [#allocation7], %s256
        // Predicated region
        $region33: #{tpu_custom_call.1} parent=31 // pred_check
          %p258 = pneg %p74
        $region34: #{tpu_custom_call.1} parent=31 // pred_check_branch
          %260 = sbr.rel (%p258) target = $region36
        $region35: #{tpu_custom_call.1} parent=31 // pred_region
          %262 = dma.done %s254, 128
        $region36: #{tpu_custom_call.1} parent=31 // pred_fallthru
          _
        %s263 = sand.u32 %s32, 1
        %s264 = scalar_lea.sflag [#allocation11], %s263
        %s265 = sand.u32 %s89, 1
        %s266 = smul.addr %s265, 8
        %s267 = scalar_lea.vmem [#allocation10], %s266
        // Predicated region
        $region37: #{tpu_custom_call.1} parent=31 // pred_check
          %p268 = pneg %p102
        $region38: #{tpu_custom_call.1} parent=31 // pred_check_branch
          %270 = sbr.rel (%p268) target = $region40
        $region39: #{tpu_custom_call.1} parent=31 // pred_region
          %272 = dma.done %s264, 128
        $region40: #{tpu_custom_call.1} parent=31 // pred_fallthru
          _
        %s273 = sand.u32 %s32, 1
        %s274 = scalar_lea.sflag [#allocation11], %s273
        %s275 = sand.u32 %s117, 1
        %s276 = smul.addr %s275, 8
        %s277 = scalar_lea.vmem [#allocation12], %s276
        // Predicated region
        $region41: #{tpu_custom_call.1} parent=31 // pred_check
          %p278 = pneg %p130
        $region42: #{tpu_custom_call.1} parent=31 // pred_check_branch
          %280 = sbr.rel (%p278) target = $region44
        $region43: #{tpu_custom_call.1} parent=31 // pred_region
          %282 = dma.done %s274, 128
        $region44: #{tpu_custom_call.1} parent=31 // pred_fallthru
          _
        %s283 = sand.u32 %s61, 1
        %s284 = scalar_lea.sflag [#allocation8], %s283
        %s285 = sand.u32 %s61, 1
        %s286 = smul.addr %s285, 8
        %s287 = scalar_lea.vmem [#allocation7], %s286
        %p288 = pneg %p74
        %p289 = pneg %p71
        %s290 = sand.u32 %s32, 1
        %s291 = scalar_lea.sflag [#allocation11], %s290
        %s292 = sand.u32 %s89, 1
        %s293 = smul.addr %s292, 8
        %s294 = scalar_lea.vmem [#allocation10], %s293
        %p295 = pneg %p102
        %p296 = pneg %p99
        %s297 = sand.u32 %s32, 1
        %s298 = scalar_lea.sflag [#allocation11], %s297
        %s299 = sand.u32 %s117, 1
        %s300 = smul.addr %s299, 8
        %s301 = scalar_lea.vmem [#allocation12], %s300
        %p302 = pneg %p130
        %p303 = pneg %p127
        %p304 = pneg %p158
        %p305 = pneg %p155
        %s306 = sand.u32 %s145, 1
        %s307 = scalar_lea.sflag [#allocation9], %s306
        %s308 = sand.u32 %s145, 1
        %s309 = smul.addr %s308, 16
        %s310 = scalar_lea.vmem [#allocation13], %s309
        %p312 = scmp.eq.s32.totalorder %s39, 0
        // Predicated region
        $region45: #{tpu_custom_call.1} parent=31 // pred_check
          %p313 = pneg %p312
        $region46: #{tpu_custom_call.1} parent=31 // pred_check_branch
          %315 = sbr.rel (%p313) target = $region48
        $region47: #{tpu_custom_call.1} parent=31 // pred_region
          %vm316 = vcmask 7168
          %317 = vst.msk [vmem:[#allocation2] sm:$0xff] %vm316, -inf
          %318 = vst.msk [vmem:[#allocation2 + $0x8] sm:$0xff] %vm316, -inf
          %319 = vst.msk [vmem:[#allocation3] sm:$0xff] %vm316, 0.0
          %320 = vst.msk [vmem:[#allocation3 + $0x8] sm:$0xff] %vm316, 0.0
          %vm321 = vcmask 261120
          %322 = vst.msk [vmem:[#allocation4] sm:$0xff] %vm321, 0.0
          %323 = vst.msk [vmem:[#allocation4 + $0x8] sm:$0xff] %vm321, 0.0
        $region48: #{tpu_custom_call.1} parent=31 // pred_fallthru
          _
        %v324 = vld [vmem:[%s257] sm:$0xf]
        %v325 = vld [vmem:[%s257 + $0x4] sm:$0xf]
        %v326 = vunpack.c.l.bf16 %v324
        %v327 = vunpack.c.l.bf16 %v325
        %v328 = vmul.f32 %v326, 0.17675781
        %v329 = vmul.f32 %v327, 0.17675781
        %v330 = vpack.c.bf16 %v328, %v328
        %v331 = vpack.c.bf16 %v329, %v329
        %v332 = vld [vmem:[%s267] sm:$0xf]
        %v333 = vld [vmem:[%s267 + $0x4] sm:$0xf]
        %vm334 = vcmask 261120
        %v336 = vsel %vm334, %v330, 0
        %v339 = vsel %vm334, %v332, 0
        %341 = vmatpush.bf16.xpose.msra.mxu0 0
        %342 = vmatpush.bf16.xpose.msra.mxu0 0
        %343 = vmatpush.bf16.xpose.msra.mxu0 0
        %344 = vmatpush.bf16.xpose.msra.mxu0 0
        %345 = vmatpush.bf16.xpose.msra.mxu0 0
        %346 = vmatpush.bf16.xpose.msra.mxu0 0
        %347 = vmatpush.bf16.xpose.msra.mxu0 0
        %348 = vmatpush.bf16.xpose.msra.mxu0 %v339
        %349 = vmatmul.bf16.gmra.mxu0 %v336
        %v350 = vpop.f32.mrf.mxu0
        %v351 = vadd.f32 0.0, %v350
        %v352 = vpop.f32.mrf.mxu0
        %353 = vdwg.mxu0
        %v355 = vsel %vm334, %v331, 0
        %v358 = vsel %vm334, %v333, 0
        %360 = vmatpush.bf16.xpose.msra.mxu0 0
        %361 = vmatpush.bf16.xpose.msra.mxu0 0
        %362 = vmatpush.bf16.xpose.msra.mxu0 0
        %363 = vmatpush.bf16.xpose.msra.mxu0 0
        %364 = vmatpush.bf16.xpose.msra.mxu0 0
        %365 = vmatpush.bf16.xpose.msra.mxu0 0
        %366 = vmatpush.bf16.xpose.msra.mxu0 0
        %367 = vmatpush.bf16.xpose.msra.mxu0 %v358
        %368 = vmatmul.bf16.gmra.mxu0 %v355
        %v369 = vpop.f32.mrf.mxu0
        %v370 = vadd.f32 0.0, %v369
        %v371 = vpop.f32.mrf.mxu0
        %372 = vdwg.mxu0
        %s373 = sld [smem:[#allocation6 + %s37]]
        %v374 = vlaneseq
        %v375 = vand.u32 %v374, 127
        %s376 = smul.u32 %s39, 8
        %v377 = vstv %s376
        %v378 = vadd.s32 %v375, %v377
        %v379 = vstv %s373
        %vm380 = vcmp.ge.s32.totalorder %v378, %v379
        %v381 = vsel %vm380, 1, 0
        %vm382 = vcmp.eq.s32.totalorder %v381, 1
        %v383 = vsel %vm382, -1e+09, %v351
        %v384 = vsel %vm382, -1e+09, %v370
        %v385 = vld [vmem:[#allocation2] sm:$0xff]
        %v386 = vld [vmem:[#allocation2 + $0x8] sm:$0xff]
        %vm387 = vcmask 64512
        %v388 = vsel %vm387, %v383, -inf
        %389 = vmax.xlane.f32.xlu0 %v388
        %v390 = vpop.xlane.xlu0 %389
        %v391 = vsel %vm387, %v384, -inf
        %392 = vmax.xlane.f32.xlu0 %v391
        %v393 = vpop.xlane.xlu0 %392
        %v394 = vmax.f32 %v385, %v390
        %v395 = vmax.f32 %v386, %v393
        %v396 = vsub.f32 %v385, %v394
        %v397 = vsub.f32 %v386, %v395
        %v398 = vmul.f32 %v396, 1.442695
        %v399 = vpow.pop %v398
        %v400 = vmul.f32 %v397, 1.442695
        %v401 = vpow.pop %v400
        %403 = vset.pattern.permute.xlu0 0
        %404 = vperm.xlu0 %403, %v394
        %v405 = vpop.permute.xlu0 %404
        %408 = vset.pattern.permute.xlu0 0
        %409 = vperm.xlu0 %408, %v395
        %v410 = vpop.permute.xlu0 %409
        %v412 = vsub.f32 %v383, %v405
        %v413 = vsub.f32 %v384, %v410
        %v414 = vmul.f32 %v412, 1.442695
        %v415 = vpow.pop %v414
        %v416 = vmul.f32 %v413, 1.442695
        %v417 = vpow.pop %v416
        %v418 = vld [vmem:[#allocation3] sm:$0xff]
        %v419 = vld [vmem:[#allocation3 + $0x8] sm:$0xff]
        %v420 = vmul.f32 %v399, %v418
        %v421 = vmul.f32 %v401, %v419
        %v422 = vsel %vm387, %v415, 0.0
        %423 = vadd.xlane.f32.xlu0 %v422
        %v424 = vpop.xlane.xlu0 %423
        %v425 = vsel %vm387, %v417, 0.0
        %426 = vadd.xlane.f32.xlu0 %v425
        %v427 = vpop.xlane.xlu0 %426
        %v428 = vadd.f32 %v420, %v424
        %v429 = vadd.f32 %v421, %v427
        %vm430 = vcmask 7168
        %431 = vst.msk [vmem:[#allocation3] sm:$0xff] %vm430, %v428
        %432 = vst.msk [vmem:[#allocation3 + $0x8] sm:$0xff] %vm430, %v429
        %v433 = vpack.c.bf16 %v415, %v415
        %v434 = vpack.c.bf16 %v417, %v417
        %v435 = vld [vmem:[%s277] sm:$0xf]
        %v436 = vld [vmem:[%s277 + $0x4] sm:$0xf]
        %v438 = vsel %vm387, %v433, 0
        %vm440 = vcmask 1043456
        %v442 = vsel %vm440, %v435, 0
        %444 = vmatpush.bf16.msra.mxu0 0
        %445 = vmatpush.bf16.msra.mxu0 0
        %446 = vmatpush.bf16.msra.mxu0 0
        %447 = vmatpush.bf16.msra.mxu0 0
        %448 = vmatpush.bf16.msra.mxu0 0
        %449 = vmatpush.bf16.msra.mxu0 0
        %450 = vmatpush.bf16.msra.mxu0 0
        %451 = vmatpush.bf16.msra.mxu0 %v442
        %452 = vmatmul.bf16.gmra.mxu0 %v438
        %v453 = vpop.f32.mrf.mxu0
        %v454 = vadd.f32 0.0, %v453
        %v455 = vpop.f32.mrf.mxu0
        %456 = vdwg.mxu0
        %v458 = vsel %vm387, %v434, 0
        %v461 = vsel %vm440, %v436, 0
        %463 = vmatpush.bf16.msra.mxu0 0
        %464 = vmatpush.bf16.msra.mxu0 0
        %465 = vmatpush.bf16.msra.mxu0 0
        %466 = vmatpush.bf16.msra.mxu0 0
        %467 = vmatpush.bf16.msra.mxu0 0
        %468 = vmatpush.bf16.msra.mxu0 0
        %469 = vmatpush.bf16.msra.mxu0 0
        %470 = vmatpush.bf16.msra.mxu0 %v461
        %471 = vmatmul.bf16.gmra.mxu0 %v458
        %v472 = vpop.f32.mrf.mxu0
        %v473 = vadd.f32 0.0, %v472
        %v474 = vpop.f32.mrf.mxu0
        %475 = vdwg.mxu0
        %v476 = vld [vmem:[#allocation4] sm:$0xff]
        %v477 = vld [vmem:[#allocation4 + $0x8] sm:$0xff]
        %479 = vset.pattern.permute.xlu0 0
        %480 = vperm.xlu0 %479, %v399
        %v481 = vpop.permute.xlu0 %480
        %484 = vset.pattern.permute.xlu0 0
        %485 = vperm.xlu0 %484, %v401
        %v486 = vpop.permute.xlu0 %485
        %v488 = vmul.f32 %v481, %v476
        %v489 = vmul.f32 %v486, %v477
        %v490 = vadd.f32 %v488, %v454
        %v491 = vadd.f32 %v489, %v473
        %492 = vst.msk [vmem:[#allocation4] sm:$0xff] %vm334, %v490
        %493 = vst.msk [vmem:[#allocation4 + $0x8] sm:$0xff] %vm334, %v491
        %494 = vst.msk [vmem:[#allocation2] sm:$0xff] %vm430, %v394
        %495 = vst.msk [vmem:[#allocation2 + $0x8] sm:$0xff] %vm430, %v395
        // Predicated region
        $region49: #{tpu_custom_call.1} parent=31 // pred_check
          %p496 = pneg %p312
        $region50: #{tpu_custom_call.1} parent=31 // pred_check_branch
          %498 = sbr.rel (%p496) target = $region52
        $region51: #{tpu_custom_call.1} parent=31 // pred_region
          %v499 = vld [vmem:[#allocation3] sm:$0xff]
          %v500 = vld [vmem:[#allocation3 + $0x8] sm:$0xff]
          %v501 = vrcp.pop %v499
          %v502 = vrcp.pop %v500
          %v503 = vld [vmem:[#allocation4] sm:$0xff]
          %v504 = vld [vmem:[#allocation4 + $0x8] sm:$0xff]
          %506 = vset.pattern.permute.xlu0 0
          %507 = vperm.xlu0 %506, %v501
          %v508 = vpop.permute.xlu0 %507
          %511 = vset.pattern.permute.xlu0 0
          %512 = vperm.xlu0 %511, %v502
          %v513 = vpop.permute.xlu0 %512
          %v515 = vmul.f32 %v503, %v508
          %v516 = vmul.f32 %v504, %v513
          %517 = vst.msk [vmem:[%s310] sm:$0xff] %vm334, %v515
          %518 = vst.msk [vmem:[%s310 + $0x8] sm:$0xff] %vm334, %v516
        $region52: #{tpu_custom_call.1} parent=31 // pred_fallthru
          _
        %s519 = sand.u32 %s145, 1
        %s520 = scalar_lea.sflag [#allocation9], %s519
        %s521 = sand.u32 %s145, 1
        %s522 = smul.addr %s521, 16
        %s523 = scalar_lea.vmem [#allocation13], %s522
        // Predicated region
        $region53: #{tpu_custom_call.1} parent=31 // pred_check
          %p524 = pneg %p155
        $region54: #{tpu_custom_call.1} parent=31 // pred_check_branch
          %526 = sbr.rel (%p524) target = $region56
        $region55: #{tpu_custom_call.1} parent=31 // pred_region
          %528 = vsyncadd %s520, 0
          %s529 = smul.addr %s37, 2
          %s530 = sadd.s32 %s38, %s529
          %s531 = smul.addr %s530, 8
          %s532 = scalar_lea.hbm %s4, %s531
          %s533 = sshll.u32 %s523, 4
          %s534 = int_to_ptr.vmem [resolvable:$true] %s533
          %s535 = sshll.u32 %s532, 4
          %s536 = int_to_ptr.hbm [resolvable:$true] %s535
          %541 = dma.vmem_to_hbm [thread:$0]  %s534, 256, %s536, %s520, 128, 128, 8
        $region56: #{tpu_custom_call.1} parent=31 // pred_fallthru
          _
      $region32: #{tpu_custom_call.1} parent=5 // pred_fallthru
        _
      %p542 = scmp.le.s32.totalorder 2, %s27
      // Predicated region
      $region57: #{tpu_custom_call.1} parent=5 // pred_check
        %p543 = pneg %p542
      $region58: #{tpu_custom_call.1} parent=5 // pred_check_branch
        %545 = sbr.rel (%p543) target = $region60
      $region59: #{tpu_custom_call.1} parent=5 // pred_region
        %s546 = ssub.s32 %s27, 2
        // Predicated region
        $region61: #{tpu_custom_call.1} parent=59 // pred_check
          %p547 = pneg %p161
        $region62: #{tpu_custom_call.1} parent=59 // pred_check_branch
          %549 = sbr.rel (%p547) target = $region64
        $region63: #{tpu_custom_call.1} parent=59 // pred_region
          %s550 = sand.u32 %s146, 1
          %s551 = scalar_lea.sflag [#allocation9], %s550
          %s552 = sand.u32 %s146, 1
          %s553 = smul.addr %s552, 16
          %s554 = scalar_lea.vmem [#allocation13], %s553
          %556 = dma.done %s551, 256
        $region64: #{tpu_custom_call.1} parent=59 // pred_fallthru
          _
      $region60: #{tpu_custom_call.1} parent=5 // pred_fallthru
        _
    $region6: #{tpu_custom_call.1} parent=1 // loop_footer
      %s31 = sadd.s32 1, %s27
    $region7: #{tpu_custom_call.1} parent=1 // loop_footer_branch
      %26 = sbr.rel target = $region3
    $region8: #{tpu_custom_call.1} parent=1 // loop_exit
      _
    %557 = vsyncpa [#allocation8], 1
    %s558 = scalar_lea.sflag [#allocation8], 1
    %559 = vsyncpa %s558, 1
    %560 = vsyncpa [#allocation11], 1
    %s561 = scalar_lea.sflag [#allocation11], 1
    %562 = vsyncpa %s561, 1
    %563 = vsyncpa [#allocation9], 1
    %s564 = scalar_lea.sflag [#allocation9], 1
    %565 = vsyncpa %s564, 1

</llo_original>
